<compile_context>
chip_gen: v5e
topology: v5e:2x2
jax: 0.10.0
libtpu: 0.0.40
codegen_flags: <defaults>
</compile_context>

<pallas_src>
import functools

import jax
import jax.numpy as jnp
import numpy as np
from jax.experimental import pallas as pl
from jax.experimental.pallas import tpu as pltpu


def _stage0_fused_kernel(x_ref, z_ref, wx_ref, wz_ref, b_ref, o_ref):
    # x_ref : (1, Cx, tn)   z_ref : (1, Cz, tn)
    # wx_ref: (E0, Cx)      wz_ref: (E0, Cz)      b_ref: (E0, 1)
    # o_ref : (1, E0, tn)
    #
    # Single accumulation chain: one live (E0, tn) f32 accumulator.
    # (If bit-level parity with the PyTorch f32 conv is ever required, add
    #  precision=jax.lax.Precision.HIGHEST to both dots; at K<=32 the default
    #  precision already passes 1e-5 tolerances and the kernel is HBM-bound.)
    acc = jnp.dot(wz_ref[...], z_ref[0], preferred_element_type=jnp.float32)
    acc = acc + jnp.dot(wx_ref[...], x_ref[0], preferred_element_type=jnp.float32)
    o_ref[0] = (acc + b_ref[...]).astype(o_ref.dtype)


def _pick_spatial_tile(B, HW, tn_max):
    """Pick the lane-tile size (static, trace-time)."""
    if HW <= tn_max:
        tn = HW                      # full extent: always a legal lane block
    else:
        tn = tn_max                  # multiple of 128 (asserted by caller)
    # v7x has 2 TensorCores/chip: keep >= 2 grid steps when possible so both
    # cores get work under dimension_semantics=("parallel", "parallel").
    if B * (-(-HW // tn)) < 2 and HW > 256:
        half = -(-HW // 2)
        tn = (-(-half // 128)) * 128     # ceil to 128 lanes; cdiv masks the tail
    return tn


@functools.partial(jax.jit, static_argnames=("tn_max", "out_dtype"))
def mdeq_segformer_stage0(z, x, wz, bz, wx, bx, *, tn_max=16384,
                          out_dtype=jnp.float32):
    """Fused stage0 of MDEQ_SegformerModule.

    z : (B, E0, H, W)  NCHW      x : (B, 3, H, W)  NCHW
    wz: (E0, E0), bz: (E0,)      wx: (E0, 3),  bx: (E0,)
        (weights in PyTorch Conv2d layout (Cout, Cin), 1x1 kernel squeezed)

    Returns (B, E0, H, W) NCHW  =  Conv1x1(z; wz, bz) + Conv1x1(x; wx, bx),
    i.e. the tensor handed to self.segformer in the original module.
    """
    B, Cz, H, W = z.shape
    _, Cx, _, _ = x.shape
    E0 = wz.shape[0]
    HW = H * W

    assert tn_max % 128 == 0, "tn_max must be a multiple of 128"

    # Free reshapes (contiguous) -- no HBM traffic beyond the kernel itself.
    x3 = x.reshape(B, Cx, HW)
    z3 = z.reshape(B, Cz, HW)
    b = (bx + bz).reshape(E0, 1).astype(jnp.float32)

    tn = _pick_spatial_tile(B, HW, tn_max)
    grid = (B, pl.cdiv(HW, tn))

    # Scoped-VMEM budget: double-buffered streamed tiles + accumulator headroom.
    # Capped at 64 MiB so it is valid on v7x (64 MiB physical) as well as
    # v5e/v6e (128 MiB physical, 16/32 MiB scoped defaults).
    est_bytes = 2 * (Cx + Cz + E0) * tn * 4 + 4 * E0 * tn * 4
    vmem_limit = int(min(64 << 20, max(32 << 20, int(est_bytes * 1.5))))

    grid_spec = pltpu.PrefetchScalarGridSpec(
        num_scalar_prefetch=0,
        grid=grid,
        in_specs=[
            pl.BlockSpec((1, Cx, tn), lambda bi, j: (bi, 0, j)),   # x rows
            pl.BlockSpec((1, Cz, tn), lambda bi, j: (bi, 0, j)),   # z rows
            pl.BlockSpec((E0, Cx), lambda bi, j: (0, 0)),          # wx (resident)
            pl.BlockSpec((E0, Cz), lambda bi, j: (0, 0)),          # wz (resident)
            pl.BlockSpec((E0, 1), lambda bi, j: (0, 0)),           # fused bias
        ],
        out_specs=pl.BlockSpec((1, E0, tn), lambda bi, j: (bi, 0, j)),
    )

    out3 = pl.pallas_call(
        _stage0_fused_kernel,
        out_shape=jax.ShapeDtypeStruct((B, E0, HW), out_dtype),
        grid_spec=grid_spec,
        compiler_params=pltpu.CompilerParams(
            dimension_semantics=("parallel", "parallel"),
            vmem_limit_bytes=vmem_limit),
    )(x3, z3, wx, wz, b)

    return out3.reshape(B, E0, H, W)


def _reference(z, x, wz, bz, wx, bx):
    # Pure-JAX reference for the same math (1x1 convs in NCHW as channel matmuls).
    xo = jnp.einsum("oi,bihw->bohw", wx, x) + bx[None, :, None, None]
    zo = jnp.einsum("oc,bchw->bohw", wz, z) + bz[None, :, None, None]
    return xo + zo


if __name__ == "__main__":
    # Small deterministic shapes consistent with the module (mit_b0: E0 = 32, x has 3 chans).
    B, H, W = 2, 16, 16
    Cx = 3          # RGB input x
    E0 = 32         # embed_dims[0] for mit_b0 (also in_chans for z)

    key = jax.random.PRNGKey(0)
    kz, kx, kwz, kbz, kwx, kbx = jax.random.split(key, 6)

    z = jax.random.normal(kz, (B, E0, H, W), dtype=jnp.float32)
    x = jax.random.normal(kx, (B, Cx, H, W), dtype=jnp.float32)

    # Deterministic parameter init, PyTorch Conv2d layout (Cout, Cin) for 1x1 kernels.
    wx = 0.05 * jax.random.normal(kwx, (E0, Cx), dtype=jnp.float32)
    bx = 0.01 * jax.random.normal(kbx, (E0,), dtype=jnp.float32)
    wz = 0.05 * jax.random.normal(kwz, (E0, E0), dtype=jnp.float32)
    bz = 0.01 * jax.random.normal(kbz, (E0,), dtype=jnp.float32)

    out = mdeq_segformer_stage0(z, x, wz, bz, wx, bx)
    out = jax.block_until_ready(out)

    ref = _reference(z, x, wz, bz, wx, bx)
    np.testing.assert_allclose(np.asarray(out), np.asarray(ref), rtol=1e-5, atol=1e-5)
    assert out.shape == (B, E0, H, W)

    print("KERNEL_OK")
</pallas_src>

<mosaic_0001>
module attributes {stable_mosaic.version = 11 : i64} {
  func.func @_stage0_fused_kernel(%arg0: i32, %arg1: i32, %arg2: memref<1x3x256xf32, #tpu.memory_space<vmem>>, %arg3: memref<1x32x256xf32, #tpu.memory_space<vmem>>, %arg4: memref<32x3xf32, #tpu.memory_space<vmem>>, %arg5: memref<32x32xf32, #tpu.memory_space<vmem>>, %arg6: memref<32x1xf32, #tpu.memory_space<vmem>>, %arg7: memref<1x32x256xf32, #tpu.memory_space<vmem>>) attributes {dimension_semantics = [#tpu.dimension_semantics<parallel>, #tpu.dimension_semantics<parallel>], iteration_bounds = array<i64: 2, 1>, scalar_prefetch = 0 : i64, scratch_operands = 0 : i64, tpu.core_type = #tpu.core_type<tc>, window_params = [{transform_indices = @transform_0, window_bounds = array<i64: 1, 3, 256>}, {transform_indices = @transform_1, window_bounds = array<i64: 1, 32, 256>}, {pipeline_mode = #tpu.pipeline_mode<synchronous>, transform_indices = @transform_2, window_bounds = array<i64: 32, 3>}, {pipeline_mode = #tpu.pipeline_mode<synchronous>, transform_indices = @transform_3, window_bounds = array<i64: 32, 32>}, {pipeline_mode = #tpu.pipeline_mode<synchronous>, transform_indices = @transform_4, window_bounds = array<i64: 32, 1>}, {transform_indices = @transform_5, window_bounds = array<i64: 1, 32, 256>}]} {
    %c0 = arith.constant 0 : index
    %c0_0 = arith.constant 0 : index
    %0 = vector.load %arg5[%c0, %c0_0] : memref<32x32xf32, #tpu.memory_space<vmem>>, vector<32x32xf32>
    %c0_1 = arith.constant 0 : index
    %c0_2 = arith.constant 0 : index
    %c0_3 = arith.constant 0 : index
    %1 = vector.load %arg3[%c0_1, %c0_2, %c0_3] : memref<1x32x256xf32, #tpu.memory_space<vmem>>, vector<1x32x256xf32>
    %2 = vector.shape_cast %1 : vector<1x32x256xf32> to vector<32x256xf32>
    %cst = arith.constant dense<0.000000e+00> : vector<32x256xf32>
    %3 = tpu.matmul %0, %2, %cst {dimension_numbers = #tpu.dot_dimension_numbers<[1], [0], [0], [1], [0, 0, 1, 1], [], []>} : vector<32x32xf32>, vector<32x256xf32>, vector<32x256xf32> -> vector<32x256xf32>
    %c0_4 = arith.constant 0 : index
    %c0_5 = arith.constant 0 : index
    %4 = vector.load %arg4[%c0_4, %c0_5] : memref<32x3xf32, #tpu.memory_space<vmem>>, vector<32x3xf32>
    %c0_6 = arith.constant 0 : index
    %c0_7 = arith.constant 0 : index
    %c0_8 = arith.constant 0 : index
    %5 = vector.load %arg2[%c0_6, %c0_7, %c0_8] : memref<1x3x256xf32, #tpu.memory_space<vmem>>, vector<1x3x256xf32>
    %6 = vector.shape_cast %5 : vector<1x3x256xf32> to vector<3x256xf32>
    %cst_9 = arith.constant dense<0.000000e+00> : vector<32x256xf32>
    %7 = tpu.matmul %4, %6, %cst_9 {dimension_numbers = #tpu.dot_dimension_numbers<[1], [0], [0], [1], [0, 0, 1, 1], [], []>} : vector<32x3xf32>, vector<3x256xf32>, vector<32x256xf32> -> vector<32x256xf32>
    %8 = arith.addf %3, %7 : vector<32x256xf32>
    %c0_10 = arith.constant 0 : index
    %c0_11 = arith.constant 0 : index
    %9 = vector.load %arg6[%c0_10, %c0_11] : memref<32x1xf32, #tpu.memory_space<vmem>>, vector<32x1xf32>
    %10 = vector.broadcast %9 : vector<32x1xf32> to vector<32x256xf32>
    %11 = arith.addf %8, %10 : vector<32x256xf32>
    %c0_12 = arith.constant 0 : index
    %c0_13 = arith.constant 0 : index
    %c0_14 = arith.constant 0 : index
    %12 = vector.load %arg7[%c0_12, %c0_13, %c0_14] : memref<1x32x256xf32, #tpu.memory_space<vmem>>, vector<1x32x256xf32>
    %13 = vector.shape_cast %12 : vector<1x32x256xf32> to vector<32x256xf32>
    %14 = vector.shape_cast %11 : vector<32x256xf32> to vector<1x32x256xf32>
    tpu.vector_store %arg7[%c0_12, %c0_13, %c0_14], %14 {strides = array<i32>} : memref<1x32x256xf32, #tpu.memory_space<vmem>>, vector<1x32x256xf32>,
    return
  }
  func.func @transform_0(%arg0: i32, %arg1: i32) -> (i32, i32, i32) {
    %c0_i32 = arith.constant 0 : i32
    %c0_i32_0 = arith.constant 0 : i32
    return %arg0, %c0_i32, %arg1 : i32, i32, i32
  }
  func.func @transform_1(%arg0: i32, %arg1: i32) -> (i32, i32, i32) {
    %c0_i32 = arith.constant 0 : i32
    %c0_i32_0 = arith.constant 0 : i32
    return %arg0, %c0_i32, %arg1 : i32, i32, i32
  }
  func.func @transform_2(%arg0: i32, %arg1: i32) -> (i32, i32) {
    %c0_i32 = arith.constant 0 : i32
    %c0_i32_0 = arith.constant 0 : i32
    %c0_i32_1 = arith.constant 0 : i32
    return %c0_i32, %c0_i32_0 : i32, i32
  }
  func.func @transform_3(%arg0: i32, %arg1: i32) -> (i32, i32) {
    %c0_i32 = arith.constant 0 : i32
    %c0_i32_0 = arith.constant 0 : i32
    %c0_i32_1 = arith.constant 0 : i32
    return %c0_i32, %c0_i32_0 : i32, i32
  }
  func.func @transform_4(%arg0: i32, %arg1: i32) -> (i32, i32) {
    %c0_i32 = arith.constant 0 : i32
    %c0_i32_0 = arith.constant 0 : i32
    %c0_i32_1 = arith.constant 0 : i32
    return %c0_i32, %c0_i32_0 : i32, i32
  }
  func.func @transform_5(%arg0: i32, %arg1: i32) -> (i32, i32, i32) {
    %c0_i32 = arith.constant 0 : i32
    %c0_i32_0 = arith.constant 0 : i32
    return %arg0, %c0_i32, %arg1 : i32, i32, i32
  }
}

</mosaic_0001>

<llo_original>
// kernel: mdeq_segformer_stage0.1
$region0: #{mdeq_segformer_stage0.1}
  #allocation0 [shape = 'u32[]', space=smem, size = 0x4, offset = 0x4, fixed_abs, tag = 'smem constant byte address 0x4 - core index']
  #allocation1 [shape = 'u32[72,128]{1,0:T(1,128)}', space=vmem, size = 0x9000, scoped, tag = 'internal scratch']
  %s0 = inlined_call_operand.vmem [shape: f32[2,3,256], index: 0, kind: input, shape index: {}]
  %s1 = inlined_call_operand.vmem [shape: f32[2,32,256], index: 1, kind: input, shape index: {}]
  %s2 = inlined_call_operand.vmem [shape: f32[32,3], index: 2, kind: input, shape index: {}]
  %s3 = inlined_call_operand.vmem [shape: f32[32,32], index: 3, kind: input, shape index: {}]
  %s4 = inlined_call_operand.vmem [shape: f32[32,1], index: 4, kind: input, shape index: {}]
  %s5 = inlined_call_operand.vmem [shape: f32[2,32,256], index: 5, kind: output, shape index: {}]
  %s6 = sld [smem:[#allocation0]]
  $region53: #{mdeq_segformer_stage0.1} parent=0
    _
  %s8 = ssub.s32 1, %s6
  %s9 = scalar_select 0, %s8, %s6
  loop: start=0, step=1, limit=4
  $region2: #{mdeq_segformer_stage0.1} parent=0 // loop_pre_header
    _
  $region3: #{mdeq_segformer_stage0.1} parent=0 // loop_header
    %s11 = sphi 0, %s15
    %p12 = scmp.ge.s32.totalorder %s11, 4
    %s18 = sphi 0, %s30
    %s19 = sphi 0, %s26
    %s20 = sphi 0, %s18
    %s21 = sphi 0, %s19
    %s22 = sphi 0, %s20
    %s23 = sphi 0, %s21
    %s35 = sphi 0, %s37
    %s38 = sphi 0, %s35
    %s39 = sphi 0, %s38
    %s55 = sphi 0, %s39
    %s63 = sphi 0, %s65
    %s66 = sphi 0, %s63
    %s67 = sphi 0, %s66
    %s83 = sphi 0, %s67
    %s87 = sphi 0, %s87
    %s89 = sphi 0, %s87
    %s90 = sphi 0, %s89
    %s104 = sphi 0, %s90
    %s108 = sphi 0, %s108
    %s110 = sphi 0, %s108
    %s111 = sphi 0, %s110
    %s125 = sphi 0, %s111
    %s129 = sphi 0, %s129
    %s131 = sphi 0, %s129
    %s132 = sphi 0, %s131
    %s146 = sphi 0, %s132
    %s154 = sphi 0, %s156
    %s157 = sphi 0, %s154
    %s158 = sphi 0, %s157
    %s174 = sphi 0, %s158
  $region4: #{mdeq_segformer_stage0.1} parent=0 // loop_header_branch
    %14 = sbr.rel (%p12) target = $region8
  $region5: #{mdeq_segformer_stage0.1} parent=0 // loop_body
    %s16 = ssub.s32 %s11, 1
    %s17 = ssub.s32 %s11, 2
    %s24 = sadd.s32 1, %s19
    %p25 = scmp.ge.s32.totalorder %s24, 1
    %s26 = scalar_select %p25, 0, %s24
    %s27 = sadd.s32 1, %s18
    %s28 = scalar_select %p25, %s27, %s18
    %p29 = scmp.ge.s32.totalorder %s28, 2
    %s30 = scalar_select %p29, 0, %s28
    %s31 = ssub.s32 %s18, %s30
    %s32 = ssub.s32 %s19, %s26
    %s33 = sor.u32 %s31, %s32
    %p34 = scmp.eq.s32.totalorder %s33, 0
    %s36 = sadd.s32 %s35, 1
    %s37 = scalar_select %p34, %s35, %s36
    %p40 = pneg %p34
    %p41 = scmp.eq.s32.totalorder %s11, 1
    %p42 = por %p40, %p41
    %p43 = scmp.ne.s32.totalorder %s35, %s38
    %p44 = scmp.eq.s32.totalorder %s11, 0
    %p45 = por %p43, %p44
    %p46 = scmp.ne.s32.totalorder %s35, %s38
    %p47 = scmp.eq.s32.totalorder %s16, 1
    %p48 = por %p46, %p47
    %p49 = scmp.ne.s32.totalorder %s38, %s39
    %p50 = scmp.eq.s32.totalorder %s16, 0
    %p51 = por %p49, %p50
    %p52 = scmp.ne.s32.totalorder %s38, %s39
    %p53 = scmp.eq.s32.totalorder %s17, 1
    %p54 = por %p52, %p53
    %p56 = scmp.ne.s32.totalorder %s39, %s55
    %p57 = scmp.eq.s32.totalorder %s17, 0
    %p58 = por %p56, %p57
    %s59 = ssub.s32 %s18, %s30
    %s60 = ssub.s32 %s19, %s26
    %s61 = sor.u32 %s59, %s60
    %p62 = scmp.eq.s32.totalorder %s61, 0
    %s64 = sadd.s32 %s63, 1
    %s65 = scalar_select %p62, %s63, %s64
    %p68 = pneg %p62
    %p69 = scmp.eq.s32.totalorder %s11, 1
    %p70 = por %p68, %p69
    %p71 = scmp.ne.s32.totalorder %s63, %s66
    %p72 = scmp.eq.s32.totalorder %s11, 0
    %p73 = por %p71, %p72
    %p74 = scmp.ne.s32.totalorder %s63, %s66
    %p75 = scmp.eq.s32.totalorder %s16, 1
    %p76 = por %p74, %p75
    %p77 = scmp.ne.s32.totalorder %s66, %s67
    %p78 = scmp.eq.s32.totalorder %s16, 0
    %p79 = por %p77, %p78
    %p80 = scmp.ne.s32.totalorder %s66, %s67
    %p81 = scmp.eq.s32.totalorder %s17, 1
    %p82 = por %p80, %p81
    %p84 = scmp.ne.s32.totalorder %s67, %s83
    %p85 = scmp.eq.s32.totalorder %s17, 0
    %p86 = por %p84, %p85
    %s88 = sadd.s32 %s87, 1
    %p91 = scmp.eq.s32.totalorder %s11, 1
    %p92 = scmp.ne.s32.totalorder %s87, %s89
    %p93 = scmp.eq.s32.totalorder %s11, 0
    %p94 = por %p92, %p93
    %p95 = scmp.ne.s32.totalorder %s87, %s89
    %p96 = scmp.eq.s32.totalorder %s16, 1
    %p97 = por %p95, %p96
    %p98 = scmp.ne.s32.totalorder %s89, %s90
    %p99 = scmp.eq.s32.totalorder %s16, 0
    %p100 = por %p98, %p99
    %p101 = scmp.ne.s32.totalorder %s89, %s90
    %p102 = scmp.eq.s32.totalorder %s17, 1
    %p103 = por %p101, %p102
    %p105 = scmp.ne.s32.totalorder %s90, %s104
    %p106 = scmp.eq.s32.totalorder %s17, 0
    %p107 = por %p105, %p106
    %s109 = sadd.s32 %s108, 1
    %p112 = scmp.eq.s32.totalorder %s11, 1
    %p113 = scmp.ne.s32.totalorder %s108, %s110
    %p114 = scmp.eq.s32.totalorder %s11, 0
    %p115 = por %p113, %p114
    %p116 = scmp.ne.s32.totalorder %s108, %s110
    %p117 = scmp.eq.s32.totalorder %s16, 1
    %p118 = por %p116, %p117
    %p119 = scmp.ne.s32.totalorder %s110, %s111
    %p120 = scmp.eq.s32.totalorder %s16, 0
    %p121 = por %p119, %p120
    %p122 = scmp.ne.s32.totalorder %s110, %s111
    %p123 = scmp.eq.s32.totalorder %s17, 1
    %p124 = por %p122, %p123
    %p126 = scmp.ne.s32.totalorder %s111, %s125
    %p127 = scmp.eq.s32.totalorder %s17, 0
    %p128 = por %p126, %p127
    %s130 = sadd.s32 %s129, 1
    %p133 = scmp.eq.s32.totalorder %s11, 1
    %p134 = scmp.ne.s32.totalorder %s129, %s131
    %p135 = scmp.eq.s32.totalorder %s11, 0
    %p136 = por %p134, %p135
    %p137 = scmp.ne.s32.totalorder %s129, %s131
    %p138 = scmp.eq.s32.totalorder %s16, 1
    %p139 = por %p137, %p138
    %p140 = scmp.ne.s32.totalorder %s131, %s132
    %p141 = scmp.eq.s32.totalorder %s16, 0
    %p142 = por %p140, %p141
    %p143 = scmp.ne.s32.totalorder %s131, %s132
    %p144 = scmp.eq.s32.totalorder %s17, 1
    %p145 = por %p143, %p144
    %p147 = scmp.ne.s32.totalorder %s132, %s146
    %p148 = scmp.eq.s32.totalorder %s17, 0
    %p149 = por %p147, %p148
    %s150 = ssub.s32 %s18, %s30
    %s151 = ssub.s32 %s19, %s26
    %s152 = sor.u32 %s150, %s151
    %p153 = scmp.eq.s32.totalorder %s152, 0
    %s155 = sadd.s32 %s154, 1
    %s156 = scalar_select %p153, %s154, %s155
    %p159 = pneg %p153
    %p160 = scmp.eq.s32.totalorder %s11, 1
    %p161 = por %p159, %p160
    %p162 = scmp.ne.s32.totalorder %s154, %s157
    %p163 = scmp.eq.s32.totalorder %s11, 0
    %p164 = por %p162, %p163
    %p165 = scmp.ne.s32.totalorder %s154, %s157
    %p166 = scmp.eq.s32.totalorder %s16, 1
    %p167 = por %p165, %p166
    %p168 = scmp.ne.s32.totalorder %s157, %s158
    %p169 = scmp.eq.s32.totalorder %s16, 0
    %p170 = por %p168, %p169
    %p171 = scmp.ne.s32.totalorder %s157, %s158
    %p172 = scmp.eq.s32.totalorder %s17, 1
    %p173 = por %p171, %p172
    %p175 = scmp.ne.s32.totalorder %s158, %s174
    %p176 = scmp.eq.s32.totalorder %s17, 0
    %p177 = por %p175, %p176
    %p178 = scmp.le.s32.totalorder 1, %s11
    %p179 = scmp.lt.s32.totalorder %s11, 3
    %p180 = pnand %p178, %p179
    %p181 = pneg %p180
    // Predicated region
    $region9: #{mdeq_segformer_stage0.1} parent=5 // pred_check
      _
    $region10: #{mdeq_segformer_stage0.1} parent=5 // pred_check_branch
      %183 = sbr.rel (%p180) target = $region12
    $region11: #{mdeq_segformer_stage0.1} parent=5 // pred_region
      %s184 = ssub.s32 %s11, 1
      // Predicated region
      $region13: #{mdeq_segformer_stage0.1} parent=11 // pred_check
        %p185 = pneg %p100
      $region14: #{mdeq_segformer_stage0.1} parent=11 // pred_check_branch
        %187 = sbr.rel (%p185) target = $region16
      $region15: #{mdeq_segformer_stage0.1} parent=11 // pred_region
        _
      $region16: #{mdeq_segformer_stage0.1} parent=11 // pred_fallthru
        _
      // Predicated region
      $region17: #{mdeq_segformer_stage0.1} parent=11 // pred_check
        %p188 = pneg %p121
      $region18: #{mdeq_segformer_stage0.1} parent=11 // pred_check_branch
        %190 = sbr.rel (%p188) target = $region20
      $region19: #{mdeq_segformer_stage0.1} parent=11 // pred_region
        _
      $region20: #{mdeq_segformer_stage0.1} parent=11 // pred_fallthru
        _
      // Predicated region
      $region21: #{mdeq_segformer_stage0.1} parent=11 // pred_check
        %p191 = pneg %p142
      $region22: #{mdeq_segformer_stage0.1} parent=11 // pred_check_branch
        %193 = sbr.rel (%p191) target = $region24
      $region23: #{mdeq_segformer_stage0.1} parent=11 // pred_region
        _
      $region24: #{mdeq_segformer_stage0.1} parent=11 // pred_fallthru
        _
    $region12: #{mdeq_segformer_stage0.1} parent=5 // pred_fallthru
      _
    %p194 = scmp.lt.s32.totalorder %s11, 2
    // Predicated region
    $region25: #{mdeq_segformer_stage0.1} parent=5 // pred_check
      %p195 = pneg %p194
    $region26: #{mdeq_segformer_stage0.1} parent=5 // pred_check_branch
      %197 = sbr.rel (%p195) target = $region28
    $region27: #{mdeq_segformer_stage0.1} parent=5 // pred_region
      // Predicated region
      $region29: #{mdeq_segformer_stage0.1} parent=27 // pred_check
        %p198 = pneg %p45
      $region30: #{mdeq_segformer_stage0.1} parent=27 // pred_check_branch
        %200 = sbr.rel (%p198) target = $region32
      $region31: #{mdeq_segformer_stage0.1} parent=27 // pred_region
        %s201 = smul.u32 2, %s19
        %p202 = scmp.lt.s32.totalorder %s18, 1
        %s203 = scalar_select %p202, %s18, 1
        %p204 = scmp.lt.s32.totalorder %s201, 1
        %s205 = scalar_select %p204, %s201, 1
        %s206 = smul.addr %s203, 2
        %s207 = sadd.s32 %s205, %s206
        %s208 = smul.addr %s207, 4
        %s209 = scalar_lea.vmem %s0, %s208
        %s210 = smul.u32 2, %s19
      $region32: #{mdeq_segformer_stage0.1} parent=27 // pred_fallthru
        _
      // Predicated region
      $region33: #{mdeq_segformer_stage0.1} parent=27 // pred_check
        %p211 = pneg %p73
      $region34: #{mdeq_segformer_stage0.1} parent=27 // pred_check_branch
        %213 = sbr.rel (%p211) target = $region36
      $region35: #{mdeq_segformer_stage0.1} parent=27 // pred_region
        %s214 = smul.u32 2, %s19
        %p215 = scmp.lt.s32.totalorder %s18, 1
        %s216 = scalar_select %p215, %s18, 1
        %p217 = scmp.lt.s32.totalorder %s214, 1
        %s218 = scalar_select %p217, %s214, 1
        %s219 = smul.addr %s216, 8
        %s220 = sadd.s32 %s218, %s219
        %s221 = smul.addr %s220, 8
        %s222 = scalar_lea.vmem %s1, %s221
        %s223 = smul.u32 2, %s19
      $region36: #{mdeq_segformer_stage0.1} parent=27 // pred_fallthru
        _
    $region28: #{mdeq_segformer_stage0.1} parent=5 // pred_fallthru
      _
    %p224 = scmp.le.s32.totalorder 1, %s11
    %p225 = scmp.lt.s32.totalorder %s11, 3
    %p226 = pnand %p224, %p225
    %p227 = pneg %p226
    // Predicated region
    $region37: #{mdeq_segformer_stage0.1} parent=5 // pred_check
      _
    $region38: #{mdeq_segformer_stage0.1} parent=5 // pred_check_branch
      %229 = sbr.rel (%p226) target = $region40
    $region39: #{mdeq_segformer_stage0.1} parent=5 // pred_region
      %s230 = ssub.s32 %s11, 1
      %s231 = smul.u32 2, %s21
      %p232 = scmp.lt.s32.totalorder %s20, 1
      %s233 = scalar_select %p232, %s20, 1
      %p234 = scmp.lt.s32.totalorder %s231, 1
      %s235 = scalar_select %p234, %s231, 1
      %s236 = smul.addr %s233, 2
      %s237 = sadd.s32 %s235, %s236
      %s238 = smul.addr %s237, 4
      %s239 = scalar_lea.vmem %s0, %s238
      %p240 = pneg %p51
      %p241 = pneg %p48
      %s242 = smul.u32 2, %s21
      %p243 = scmp.lt.s32.totalorder %s20, 1
      %s244 = scalar_select %p243, %s20, 1
      %p245 = scmp.lt.s32.totalorder %s242, 1
      %s246 = scalar_select %p245, %s242, 1
      %s247 = smul.addr %s244, 8
      %s248 = sadd.s32 %s246, %s247
      %s249 = smul.addr %s248, 8
      %s250 = scalar_lea.vmem %s1, %s249
      %p251 = pneg %p79
      %p252 = pneg %p76
      %p253 = pneg %p100
      %p254 = pneg %p97
      %p255 = pneg %p121
      %p256 = pneg %p118
      %p257 = pneg %p142
      %p258 = pneg %p139
      %p259 = pneg %p170
      %p260 = pneg %p167
      %s261 = smul.u32 2, %s21
      %p262 = scmp.lt.s32.totalorder %s20, 1
      %s263 = scalar_select %p262, %s20, 1
      %p264 = scmp.lt.s32.totalorder %s261, 1
      %s265 = scalar_select %p264, %s261, 1
      %s266 = smul.addr %s263, 8
      %s267 = sadd.s32 %s265, %s266
      %s268 = smul.addr %s267, 8
      %s269 = scalar_lea.vmem %s5, %s268
      %s270 = smul.u32 2, %s21
      %p271 = scmp.lt.s32.totalorder %s20, 1
      %s272 = scalar_select %p271, %s20, 1
      %p273 = scmp.lt.s32.totalorder %s270, 1
      %s274 = scalar_select %p273, %s270, 1
      %s275 = smul.addr %s272, 2
      %s276 = sadd.s32 %s274, %s275
      %s277 = smul.addr %s276, 4
      %s278 = scalar_lea.vmem %s0, %s277
      %s279 = smul.u32 2, %s21
      %s280 = smul.u32 2, %s21
      %p281 = scmp.lt.s32.totalorder %s20, 1
      %s282 = scalar_select %p281, %s20, 1
      %p283 = scmp.lt.s32.totalorder %s280, 1
      %s284 = scalar_select %p283, %s280, 1
      %s285 = smul.addr %s282, 8
      %s286 = sadd.s32 %s284, %s285
      %s287 = smul.addr %s286, 8
      %s288 = scalar_lea.vmem %s1, %s287
      %s289 = smul.u32 2, %s21
      %s290 = smul.u32 2, %s21
      %p291 = scmp.lt.s32.totalorder %s20, 1
      %s292 = scalar_select %p291, %s20, 1
      %p293 = scmp.lt.s32.totalorder %s290, 1
      %s294 = scalar_select %p293, %s290, 1
      %s295 = smul.addr %s292, 8
      %s296 = sadd.s32 %s294, %s295
      %s297 = smul.addr %s296, 8
      %s298 = scalar_lea.vmem %s5, %s297
      %s299 = smul.u32 2, %s21
      %v300 = vld [vmem:[%s3] sm:$0xff]
      %v301 = vld [vmem:[%s3 + $0x8] sm:$0xff]
      %v302 = vld [vmem:[%s3 + $0x10] sm:$0xff]
      %v303 = vld [vmem:[%s3 + $0x18] sm:$0xff]
      %v304 = vld [vmem:[%s288] sm:$0xff]
      %v305 = vld [vmem:[%s288 + $0x8] sm:$0xff]
      %v306 = vld [vmem:[%s288 + $0x10] sm:$0xff]
      %v307 = vld [vmem:[%s288 + $0x18] sm:$0xff]
      %v308 = vld [vmem:[%s288 + $0x20] sm:$0xff]
      %v309 = vld [vmem:[%s288 + $0x28] sm:$0xff]
      %v310 = vld [vmem:[%s288 + $0x30] sm:$0xff]
      %v311 = vld [vmem:[%s288 + $0x38] sm:$0xff]
      %v312 = vld [vmem:[%s2] sm:$0xff]
      %v313 = vld [vmem:[%s2 + $0x8] sm:$0xff]
      %v314 = vld [vmem:[%s2 + $0x10] sm:$0xff]
      %v315 = vld [vmem:[%s2 + $0x18] sm:$0xff]
      %v316 = vld [vmem:[%s278] sm:$0x77]
      %318 = vst [vmem:[#allocation1] ss:$2 sm:$0xff] %v316
      %v319 = vld.sshfl [vmem:[#allocation1] sm:$0xff pattern:$0x75316420]
      %v320 = vld.sshfl [vmem:[#allocation1 + $0x8] sm:$0xff pattern:$0x75316420]
      %vm321 = vcmask 23552
      %v323 = vsel %vm321, %v312, 0
      %v326 = vsel %vm321, %v313, 0
      %v329 = vsel %vm321, %v314, 0
      %v332 = vsel %vm321, %v315, 0
      %vm334 = vcmask 1042432
      %v335 = vsel %vm334, %v319, 0
      %v337 = vsel %vm334, %v320, 0
      %339 = vmatpush.msra.mxu0 0.0
      %340 = vmatpush.msra.mxu0 0.0
      %341 = vmatpush.msra.mxu0 0.0
      %342 = vmatpush.msra.mxu0 0.0
      %343 = vmatpush.msra.mxu0 0.0
      %344 = vmatpush.msra.mxu0 0.0
      %345 = vmatpush.msra.mxu0 0.0
      %346 = vmatpush.msra.mxu0 0.0
      %347 = vmatpush.msra.mxu0 0.0
      %348 = vmatpush.msra.mxu0 0.0
      %349 = vmatpush.msra.mxu0 0.0
      %350 = vmatpush.msra.mxu0 0.0
      %351 = vmatpush.msra.mxu0 0.0
      %352 = vmatpush.msra.mxu0 0.0
      %353 = vmatpush.msra.mxu0 0.0
      %354 = vmatpush.msra.mxu0 %v335
      %355 = vmatmul.f32.gmra.mxu0 %v323
      %v356 = vpop.f32.mrf.mxu0
      %v357 = vadd.f32 0.0, %v356
      %358 = vmatmul.f32.gmra.mxu0 %v326
      %v359 = vpop.f32.mrf.mxu0
      %v360 = vadd.f32 0.0, %v359
      %361 = vmatmul.f32.gmra.mxu0 %v329
      %v362 = vpop.f32.mrf.mxu0
      %v363 = vadd.f32 0.0, %v362
      %364 = vmatmul.f32.gmra.mxu0 %v332
      %v365 = vpop.f32.mrf.mxu0
      %v366 = vadd.f32 0.0, %v365
      %367 = vdwg.mxu0
      %368 = vmatpush.msra.mxu0 0.0
      %369 = vmatpush.msra.mxu0 0.0
      %370 = vmatpush.msra.mxu0 0.0
      %371 = vmatpush.msra.mxu0 0.0
      %372 = vmatpush.msra.mxu0 0.0
      %373 = vmatpush.msra.mxu0 0.0
      %374 = vmatpush.msra.mxu0 0.0
      %375 = vmatpush.msra.mxu0 0.0
      %376 = vmatpush.msra.mxu0 0.0
      %377 = vmatpush.msra.mxu0 0.0
      %378 = vmatpush.msra.mxu0 0.0
      %379 = vmatpush.msra.mxu0 0.0
      %380 = vmatpush.msra.mxu0 0.0
      %381 = vmatpush.msra.mxu0 0.0
      %382 = vmatpush.msra.mxu0 0.0
      %383 = vmatpush.msra.mxu0 %v337
      %384 = vmatmul.f32.gmra.mxu0 %v323
      %v385 = vpop.f32.mrf.mxu0
      %v386 = vadd.f32 0.0, %v385
      %387 = vmatmul.f32.gmra.mxu0 %v326
      %v388 = vpop.f32.mrf.mxu0
      %v389 = vadd.f32 0.0, %v388
      %390 = vmatmul.f32.gmra.mxu0 %v329
      %v391 = vpop.f32.mrf.mxu0
      %v392 = vadd.f32 0.0, %v391
      %393 = vmatmul.f32.gmra.mxu0 %v332
      %v394 = vpop.f32.mrf.mxu0
      %v395 = vadd.f32 0.0, %v394
      %396 = vdwg.mxu0
      %vm397 = vcmask 261120
      %v399 = vsel %vm397, %v300, 0
      %v402 = vsel %vm397, %v301, 0
      %v405 = vsel %vm397, %v302, 0
      %v408 = vsel %vm397, %v303, 0
      %410 = vmatpush.msra.mxu0 0.0
      %411 = vmatpush.msra.mxu0 0.0
      %412 = vmatpush.msra.mxu0 0.0
      %413 = vmatpush.msra.mxu0 0.0
      %414 = vmatpush.msra.mxu0 0.0
      %415 = vmatpush.msra.mxu0 0.0
      %416 = vmatpush.msra.mxu0 0.0
      %417 = vmatpush.msra.mxu0 0.0
      %418 = vmatpush.msra.mxu0 0.0
      %419 = vmatpush.msra.mxu0 0.0
      %420 = vmatpush.msra.mxu0 0.0
      %421 = vmatpush.msra.mxu0 0.0
      %422 = vmatpush.msra.mxu0 %v310
      %423 = vmatpush.msra.mxu0 %v308
      %424 = vmatpush.msra.mxu0 %v306
      %425 = vmatpush.msra.mxu0 %v304
      %426 = vmatmul.f32.gmra.mxu0 %v399
      %v427 = vpop.f32.mrf.mxu0
      %v428 = vadd.f32 %v357, %v427
      %429 = vmatmul.f32.gmra.mxu0 %v402
      %v430 = vpop.f32.mrf.mxu0
      %v431 = vadd.f32 %v360, %v430
      %432 = vmatmul.f32.gmra.mxu0 %v405
      %v433 = vpop.f32.mrf.mxu0
      %v434 = vadd.f32 %v363, %v433
      %435 = vmatmul.f32.gmra.mxu0 %v408
      %v436 = vpop.f32.mrf.mxu0
      %v437 = vadd.f32 %v366, %v436
      %438 = vdwg.mxu0
      %439 = vmatpush.msra.mxu0 0.0
      %440 = vmatpush.msra.mxu0 0.0
      %441 = vmatpush.msra.mxu0 0.0
      %442 = vmatpush.msra.mxu0 0.0
      %443 = vmatpush.msra.mxu0 0.0
      %444 = vmatpush.msra.mxu0 0.0
      %445 = vmatpush.msra.mxu0 0.0
      %446 = vmatpush.msra.mxu0 0.0
      %447 = vmatpush.msra.mxu0 0.0
      %448 = vmatpush.msra.mxu0 0.0
      %449 = vmatpush.msra.mxu0 0.0
      %450 = vmatpush.msra.mxu0 0.0
      %451 = vmatpush.msra.mxu0 %v311
      %452 = vmatpush.msra.mxu0 %v309
      %453 = vmatpush.msra.mxu0 %v307
      %454 = vmatpush.msra.mxu0 %v305
      %455 = vmatmul.f32.gmra.mxu0 %v399
      %v456 = vpop.f32.mrf.mxu0
      %v457 = vadd.f32 %v386, %v456
      %458 = vmatmul.f32.gmra.mxu0 %v402
      %v459 = vpop.f32.mrf.mxu0
      %v460 = vadd.f32 %v389, %v459
      %461 = vmatmul.f32.gmra.mxu0 %v405
      %v462 = vpop.f32.mrf.mxu0
      %v463 = vadd.f32 %v392, %v462
      %464 = vmatmul.f32.gmra.mxu0 %v408
      %v465 = vpop.f32.mrf.mxu0
      %v466 = vadd.f32 %v395, %v465
      %467 = vdwg.mxu0
      %v468 = vld [vmem:[%s4] sm:$0xff]
      %v469 = vld [vmem:[%s4 + $0x8] sm:$0xff]
      %v470 = vld [vmem:[%s4 + $0x10] sm:$0xff]
      %v471 = vld [vmem:[%s4 + $0x18] sm:$0xff]
      %473 = vset.pattern.permute.xlu0 0
      %474 = vperm.xlu0 %473, %v468
      %v475 = vpop.permute.xlu0 %474
      %478 = vset.pattern.permute.xlu0 0
      %479 = vperm.xlu0 %478, %v469
      %v480 = vpop.permute.xlu0 %479
      %483 = vset.pattern.permute.xlu0 0
      %484 = vperm.xlu0 %483, %v470
      %v485 = vpop.permute.xlu0 %484
      %488 = vset.pattern.permute.xlu0 0
      %489 = vperm.xlu0 %488, %v471
      %v490 = vpop.permute.xlu0 %489
      %v492 = vadd.f32 %v428, %v475
      %v493 = vadd.f32 %v457, %v475
      %v494 = vadd.f32 %v431, %v480
      %v495 = vadd.f32 %v460, %v480
      %v496 = vadd.f32 %v434, %v485
      %v497 = vadd.f32 %v463, %v485
      %v498 = vadd.f32 %v437, %v490
      %v499 = vadd.f32 %v466, %v490
      %500 = vst [vmem:[%s298] sm:$0xff] %v492
      %501 = vst [vmem:[%s298 + $0x8] sm:$0xff] %v493
      %502 = vst [vmem:[%s298 + $0x10] sm:$0xff] %v494
      %503 = vst [vmem:[%s298 + $0x18] sm:$0xff] %v495
      %504 = vst [vmem:[%s298 + $0x20] sm:$0xff] %v496
      %505 = vst [vmem:[%s298 + $0x28] sm:$0xff] %v497
      %506 = vst [vmem:[%s298 + $0x30] sm:$0xff] %v498
      %507 = vst [vmem:[%s298 + $0x38] sm:$0xff] %v499
      %s508 = smul.u32 2, %s21
      %p509 = scmp.lt.s32.totalorder %s20, 1
      %s510 = scalar_select %p509, %s20, 1
      %p511 = scmp.lt.s32.totalorder %s508, 1
      %s512 = scalar_select %p511, %s508, 1
      %s513 = smul.addr %s510, 8
      %s514 = sadd.s32 %s512, %s513
      %s515 = smul.addr %s514, 8
      %s516 = scalar_lea.vmem %s5, %s515
      // Predicated region
      $region41: #{mdeq_segformer_stage0.1} parent=39 // pred_check
        %p517 = pneg %p167
      $region42: #{mdeq_segformer_stage0.1} parent=39 // pred_check_branch
        %519 = sbr.rel (%p517) target = $region44
      $region43: #{mdeq_segformer_stage0.1} parent=39 // pred_region
        %s520 = smul.u32 2, %s21
      $region44: #{mdeq_segformer_stage0.1} parent=39 // pred_fallthru
        _
    $region40: #{mdeq_segformer_stage0.1} parent=5 // pred_fallthru
      _
    %p521 = scmp.le.s32.totalorder 2, %s11
    // Predicated region
    $region45: #{mdeq_segformer_stage0.1} parent=5 // pred_check
      %p522 = pneg %p521
    $region46: #{mdeq_segformer_stage0.1} parent=5 // pred_check_branch
      %524 = sbr.rel (%p522) target = $region48
    $region47: #{mdeq_segformer_stage0.1} parent=5 // pred_region
      %s525 = ssub.s32 %s11, 2
      // Predicated region
      $region49: #{mdeq_segformer_stage0.1} parent=47 // pred_check
        %p526 = pneg %p173
      $region50: #{mdeq_segformer_stage0.1} parent=47 // pred_check_branch
        %528 = sbr.rel (%p526) target = $region52
      $region51: #{mdeq_segformer_stage0.1} parent=47 // pred_region
        %s529 = smul.u32 2, %s23
        %p530 = scmp.lt.s32.totalorder %s22, 1
        %s531 = scalar_select %p530, %s22, 1
        %p532 = scmp.lt.s32.totalorder %s529, 1
        %s533 = scalar_select %p532, %s529, 1
        %s534 = smul.addr %s531, 8
        %s535 = sadd.s32 %s533, %s534
        %s536 = smul.addr %s535, 8
        %s537 = scalar_lea.vmem %s5, %s536
      $region52: #{mdeq_segformer_stage0.1} parent=47 // pred_fallthru
        _
    $region48: #{mdeq_segformer_stage0.1} parent=5 // pred_fallthru
      _
  $region6: #{mdeq_segformer_stage0.1} parent=0 // loop_footer
    %s15 = sadd.s32 1, %s11
  $region7: #{mdeq_segformer_stage0.1} parent=0 // loop_footer_branch
    %10 = sbr.rel target = $region3
  $region8: #{mdeq_segformer_stage0.1} parent=0 // loop_exit
    _

</llo_original>
